<compile_context>
chip_gen: v7x
topology: tpu7x:2x2x1
jax: 0.10.0
libtpu: 0.0.40
codegen_flags: <defaults>
</compile_context>

<pallas_src>
import functools
import math

import jax
import jax.numpy as jnp
from jax.experimental import pallas as pl
from jax.experimental.pallas import tpu as pltpu


# --------------------------------------------------------------------------- config
_LANE_QUANTUM = 256                       # multiple of 128; fills v6e/v7x 256-wide MXU,
                                          # still lane-aligned (harmless) on v5e.
_FULL_K_VMEM_BUDGET = 40 * 1024 * 1024    # whole-K path allowed if the double-buffered
                                          # tile footprint stays under this.
_VMEM_LIMIT_FLOOR = 32 * 1024 * 1024
_VMEM_LIMIT_CEIL = 56 * 1024 * 1024       # headroom under v7x's 64 MiB physical VMEM.


# --------------------------------------------------------------------------- kernels
def _dense_kernel_fullk(x_ref, w_ref, b_ref, o_ref, *, act_fn, mxu_dtype):
    """Whole-K matmul: grid = (M tiles, N tiles); no accumulator scratch needed."""
    x = x_ref[...]
    w = w_ref[...]
    if mxu_dtype is not None:
        x = x.astype(mxu_dtype)
        w = w.astype(mxu_dtype)
    acc = jnp.dot(x, w, preferred_element_type=jnp.float32)
    acc = acc + b_ref[...].astype(jnp.float32)
    if act_fn is not None:
        acc = act_fn(acc)
    o_ref[...] = acc.astype(o_ref.dtype)


def _dense_kernel_ktiled(x_ref, w_ref, b_ref, o_ref, acc_ref, *, act_fn, mxu_dtype):
    """K-tiled matmul: grid = (M, N, K); f32 VMEM accumulator resident across K."""
    k = pl.program_id(2)

    @pl.when(k == 0)
    def _():
        acc_ref[...] = jnp.zeros_like(acc_ref)

    x = x_ref[...]
    w = w_ref[...]
    if mxu_dtype is not None:
        x = x.astype(mxu_dtype)
        w = w.astype(mxu_dtype)
    acc_ref[...] += jnp.dot(x, w, preferred_element_type=jnp.float32)

    @pl.when(k == pl.num_programs(2) - 1)
    def _():
        acc = acc_ref[...] + b_ref[...].astype(jnp.float32)
        if act_fn is not None:
            acc = act_fn(acc)
        o_ref[...] = acc.astype(o_ref.dtype)


# --------------------------------------------------------------------------- activations
_ACTIVATIONS = {
    "relu": lambda x: jnp.maximum(x, 0.0),
    "relu6": lambda x: jnp.clip(x, 0.0, 6.0),
    "gelu": lambda x: jax.nn.gelu(x, approximate=False),  # exact erf, like F.gelu
    "tanh": jnp.tanh,
    "sigmoid": jax.nn.sigmoid,
    "silu": jax.nn.silu,
    "softplus": jax.nn.softplus,
    "elu": jax.nn.elu,
    "leaky_relu": jax.nn.leaky_relu,
}
_TRANSCENDENTAL_ACTS = {"gelu", "tanh", "sigmoid", "silu", "softplus", "elu"}
# TODO(synk): only a subset of torch.nn.functional activations is mapped here.


def _get_activation(name):
    if name is None:
        return None
    if isinstance(name, str) and name in _ACTIVATIONS:
        return _ACTIVATIONS[name]
    raise ValueError("activation not found")


# --------------------------------------------------------------------------- helpers
def _round_up(x, m):
    return ((x + m - 1) // m) * m


def _sublane_quantum(dtype):
    # 8 for 4-byte, 16 for 2-byte, 32 for 1-byte dtypes (sub-32-bit sublane packing).
    return max(8, 32 // jnp.dtype(dtype).itemsize)


def _choose_tile(dim, block, quantum):
    """Pick a tile size (multiple of `quantum`) and the padded dim extent.

    Prefers a divisor of the quantum-padded dim in [block//2, block] (no extra
    padding); otherwise keeps the tuned `block` and pads the dim up to it -- never
    collapses to tiny tiles for awkward shapes.
    """
    dim_q = _round_up(dim, quantum)
    block = _round_up(block, quantum)
    if dim_q <= block:
        return dim_q, dim_q
    t = block
    floor = max(quantum, block // 2)
    while t >= floor:
        if dim_q % t == 0:
            return t, dim_q
        t -= quantum
    return block, _round_up(dim_q, block)


def pad_dense_params(weight_t, bias, *, lane_quantum=_LANE_QUANTUM):
    """Pad the static (K, N) weight / (N,) bias to lane-aligned multiples ONCE.

    Hoists the per-call jnp.pad of the largest operand out of dense_forward; pass the
    logical out_features as n_out when calling dense_forward with padded params.
    """
    K, N = weight_t.shape
    K_pad = _round_up(K, lane_quantum)
    N_pad = _round_up(N, lane_quantum)
    if (K_pad, N_pad) != (K, N):
        weight_t = jnp.pad(weight_t, ((0, K_pad - K), (0, N_pad - N)))
        bias = jnp.pad(bias, (0, N_pad - N))
    return weight_t, bias


# --------------------------------------------------------------------------- wrapper
def dense_forward(
    x,
    weight_t,
    bias,
    *,
    activation=None,
    n_out=None,
    block_m=512,
    block_n=1024,
    block_k=512,
    mxu_dtype=None,
):
    """y = activation(x @ weight_t + bias).

    x        : (..., K)   activations
    weight_t : (Kw, Nw)   transpose of nn.Linear.weight; Kw >= K (zero-padded ok)
    bias     : (Nw,)
    n_out    : logical output width (defaults to Nw) -- lets callers pass params that
               were pre-padded with pad_dense_params without re-padding here.
    mxu_dtype: optionally cast matmul operands (e.g. jnp.bfloat16) while keeping f32
               accumulation; off by default so results match the f32 reference.
    """
    act_fn = _get_activation(activation)

    *lead, K = x.shape
    Kw, Nw = weight_t.shape
    assert K <= Kw, f"x inner dim {K} exceeds weight rows {Kw}"
    assert bias.shape == (Nw,)
    N = Nw if n_out is None else n_out

    M = 1
    for d in lead:
        M *= d
    x2d = x.reshape(M, K)

    in_itemsize = jnp.dtype(x.dtype).itemsize
    out_dtype = x.dtype
    out_itemsize = jnp.dtype(out_dtype).itemsize

    # ----- tile selection (dtype-aware sublane quantum, 256-wide lane quantum) ------
    sub_q = _sublane_quantum(x.dtype)
    tm, M_pad = _choose_tile(M, block_m, sub_q)
    tn, N_pad = _choose_tile(Nw, block_n, _LANE_QUANTUM)

    # Prefer holding the whole K reduction in one tile: no K grid axis, no f32 scratch,
    # no per-step accumulator read-modify-write.
    K_q = _round_up(Kw, _LANE_QUANTUM)
    full_k_bytes = (
        2 * (tm * K_q + K_q * tn + tn) * in_itemsize + 2 * tm * tn * out_itemsize
    )
    if full_k_bytes <= _FULL_K_VMEM_BUDGET:
        tk, K_pad = K_q, K_q
        k_tiled = False
        vmem_needed = full_k_bytes
    else:
        tk, K_pad = _choose_tile(Kw, block_k, _LANE_QUANTUM)
        k_tiled = True
        vmem_needed = (
            2 * (tm * tk + tk * tn + tn) * in_itemsize
            + 2 * tm * tn * out_itemsize
            + tm * tn * 4  # f32 accumulator scratch
        )

    # ----- zero-pad operands to tile multiples (all no-ops when already aligned) ----
    if (M_pad, K_pad) != (M, K):
        x2d = jnp.pad(x2d, ((0, M_pad - M), (0, K_pad - K)))
    w2d = weight_t
    if (K_pad, N_pad) != (Kw, Nw):
        # Pre-pad params with pad_dense_params so this branch is skipped per call.
        w2d = jnp.pad(w2d, ((0, K_pad - Kw), (0, N_pad - Nw)))
    b2d = bias.reshape(1, Nw)
    if N_pad != Nw:
        b2d = jnp.pad(b2d, ((0, 0), (0, N_pad - Nw)))

    grid_m = M_pad // tm
    grid_n = N_pad // tn

    cost = pl.CostEstimate(
        flops=2 * M_pad * N_pad * K_pad,
        transcendentals=(M_pad * N_pad if activation in _TRANSCENDENTAL_ACTS else 0),
        bytes_accessed=(
            M_pad * K_pad * in_itemsize * grid_n      # x re-read per N tile
            + K_pad * N_pad * in_itemsize * grid_m    # w re-read per M tile
            + N_pad * in_itemsize
            + M_pad * N_pad * out_itemsize
        ),
    )

    vmem_limit = int(
        min(max(vmem_needed * 6 // 5, _VMEM_LIMIT_FLOOR), _VMEM_LIMIT_CEIL)
    )

    if not k_tiled:
        grid = (grid_m, grid_n)
        kernel = functools.partial(
            _dense_kernel_fullk, act_fn=act_fn, mxu_dtype=mxu_dtype
        )
        in_specs = [
            pl.BlockSpec((tm, K_pad), lambda i, j: (i, 0)),
            pl.BlockSpec((K_pad, tn), lambda i, j: (0, j)),
            pl.BlockSpec((1, tn), lambda i, j: (0, j)),
        ]
        out_specs = pl.BlockSpec((tm, tn), lambda i, j: (i, j))
        scratch_shapes = []
        dim_sem = ("parallel", "parallel")
    else:
        grid = (grid_m, grid_n, K_pad // tk)
        kernel = functools.partial(
            _dense_kernel_ktiled, act_fn=act_fn, mxu_dtype=mxu_dtype
        )
        in_specs = [
            pl.BlockSpec((tm, tk), lambda i, j, k: (i, k)),
            pl.BlockSpec((tk, tn), lambda i, j, k: (k, j)),
            pl.BlockSpec((1, tn), lambda i, j, k: (0, j)),
        ]
        out_specs = pl.BlockSpec((tm, tn), lambda i, j, k: (i, j))
        scratch_shapes = [pltpu.VMEM((tm, tn), jnp.float32)]
        dim_sem = ("parallel", "parallel", "arbitrary")

    out2d = pl.pallas_call(
        kernel,
        out_shape=jax.ShapeDtypeStruct((M_pad, N_pad), out_dtype),
        grid_spec=pltpu.PrefetchScalarGridSpec(
            num_scalar_prefetch=0,
            grid=grid,
            in_specs=in_specs,
            out_specs=out_specs,
            scratch_shapes=scratch_shapes,
        ),
        compiler_params=pltpu.CompilerParams(
            dimension_semantics=dim_sem,
            vmem_limit_bytes=vmem_limit,
        ),
        cost_estimate=cost,
    )(x2d, w2d, b2d)

    out2d = out2d[:M, :N]
    return out2d.reshape(*lead, N)


# --------------------------------------------------------------------------- init
def init_dense_params(key, in_features, out_features, dtype=jnp.float32):
    """Matches nn.Linear default init: U(-1/sqrt(in), 1/sqrt(in))."""
    kw, kb = jax.random.split(key)
    bound = 1.0 / math.sqrt(in_features)
    # PyTorch stores weight as (out, in); we keep the transposed (in, out) layout.
    weight_t = jax.random.uniform(
        kw, (in_features, out_features), dtype=dtype, minval=-bound, maxval=bound
    )
    bias = jax.random.uniform(
        kb, (out_features,), dtype=dtype, minval=-bound, maxval=bound
    )
    return weight_t, bias


if __name__ == "__main__":
    key = jax.random.PRNGKey(0)
    k_x, k_p = jax.random.split(key)

    batch, seq, hidden, out_features = 2, 8, 32, 64
    x = jax.random.normal(k_x, (batch, seq, hidden), dtype=jnp.float32)
    weight_t, bias = init_dense_params(k_p, hidden, out_features)

    # --- activation="relu" path -------------------------------------------------
    y = jax.block_until_ready(dense_forward(x, weight_t, bias, activation="relu"))
    y_ref = jnp.maximum(x @ weight_t + bias, 0.0)
    assert y.shape == (batch, seq, out_features)
    assert jnp.allclose(y, y_ref, atol=1e-5, rtol=1e-5)

    # --- activation=None path ----------------------------------------------------
    y_none = jax.block_until_ready(dense_forward(x, weight_t, bias, activation=None))
    assert jnp.allclose(y_none, x @ weight_t + bias, atol=1e-5, rtol=1e-5)

    # --- transcendental activation path -------------------------------------------
    y_sig = jax.block_until_ready(dense_forward(x, weight_t, bias, activation="sigmoid"))
    assert jnp.allclose(y_sig, jax.nn.sigmoid(x @ weight_t + bias), atol=1e-5, rtol=1e-5)

    # --- pre-padded (hoisted) params path -----------------------------------------
    w_pad, b_pad = pad_dense_params(weight_t, bias)
    y_pp = jax.block_until_ready(
        dense_forward(x, w_pad, b_pad, activation="relu", n_out=out_features)
    )
    assert y_pp.shape == (batch, seq, out_features)
    assert jnp.allclose(y_pp, y_ref, atol=1e-5, rtol=1e-5)

    print("KERNEL_OK")
</pallas_src>

<mosaic_0001>
module attributes {stable_mosaic.version = 11 : i64} {
  func.func @_dense_kernel_fullk(%arg0: i32, %arg1: i32, %arg2: memref<16x256xf32, #tpu.memory_space<vmem>>, %arg3: memref<256x256xf32, #tpu.memory_space<vmem>>, %arg4: memref<1x256xf32, #tpu.memory_space<vmem>>, %arg5: memref<16x256xf32, #tpu.memory_space<vmem>>) attributes {dimension_semantics = [#tpu.dimension_semantics<parallel>, #tpu.dimension_semantics<parallel>], iteration_bounds = array<i64: 1, 1>, scalar_prefetch = 0 : i64, scratch_operands = 0 : i64, tpu.core_type = #tpu.core_type<tc>, window_params = [{transform_indices = @transform_0, window_bounds = array<i64: 16, 256>}, {transform_indices = @transform_1, window_bounds = array<i64: 256, 256>}, {transform_indices = @transform_2, window_bounds = array<i64: 1, 256>}, {transform_indices = @transform_3, window_bounds = array<i64: 16, 256>}]} {
    %c0 = arith.constant 0 : index
    %c0_0 = arith.constant 0 : index
    %0 = vector.load %arg2[%c0, %c0_0] : memref<16x256xf32, #tpu.memory_space<vmem>>, vector<16x256xf32>
    %c0_1 = arith.constant 0 : index
    %c0_2 = arith.constant 0 : index
    %1 = vector.load %arg3[%c0_1, %c0_2] : memref<256x256xf32, #tpu.memory_space<vmem>>, vector<256x256xf32>
    %cst = arith.constant dense<0.000000e+00> : vector<16x256xf32>
    %2 = tpu.matmul %0, %1, %cst {dimension_numbers = #tpu.dot_dimension_numbers<[1], [0], [0], [1], [0, 0, 1, 1], [], []>} : vector<16x256xf32>, vector<256x256xf32>, vector<16x256xf32> -> vector<16x256xf32>
    %c0_3 = arith.constant 0 : index
    %c0_4 = arith.constant 0 : index
    %3 = vector.load %arg4[%c0_3, %c0_4] : memref<1x256xf32, #tpu.memory_space<vmem>>, vector<1x256xf32>
    %4 = vector.broadcast %3 : vector<1x256xf32> to vector<16x256xf32>
    %5 = arith.addf %2, %4 : vector<16x256xf32>
    %cst_5 = arith.constant 0.000000e+00 : f32
    %6 = vector.broadcast %cst_5 : f32 to vector<16x256xf32>
    %7 = arith.maximumf %5, %6 : vector<16x256xf32>
    %c0_6 = arith.constant 0 : index
    %c0_7 = arith.constant 0 : index
    %8 = vector.load %arg5[%c0_6, %c0_7] : memref<16x256xf32, #tpu.memory_space<vmem>>, vector<16x256xf32>
    tpu.vector_store %arg5[%c0_6, %c0_7], %7 {strides = array<i32>} : memref<16x256xf32, #tpu.memory_space<vmem>>, vector<16x256xf32>,
    return
  }
  func.func @transform_0(%arg0: i32, %arg1: i32) -> (i32, i32) {
    %c0_i32 = arith.constant 0 : i32
    %c0_i32_0 = arith.constant 0 : i32
    return %arg0, %c0_i32 : i32, i32
  }
  func.func @transform_1(%arg0: i32, %arg1: i32) -> (i32, i32) {
    %c0_i32 = arith.constant 0 : i32
    %c0_i32_0 = arith.constant 0 : i32
    return %c0_i32, %arg1 : i32, i32
  }
  func.func @transform_2(%arg0: i32, %arg1: i32) -> (i32, i32) {
    %c0_i32 = arith.constant 0 : i32
    %c0_i32_0 = arith.constant 0 : i32
    return %c0_i32, %arg1 : i32, i32
  }
  func.func @transform_3(%arg0: i32, %arg1: i32) -> (i32, i32) {
    %c0_i32 = arith.constant 0 : i32
    return %arg0, %arg1 : i32, i32
  }
}

</mosaic_0001>

<llo_original>
// kernel: tpu_custom_call.1
$region0: #{tpu_custom_call.1}
  #allocation0 [shape = 'u32[]', space=smem, size = 0x4, offset = 0x4, fixed_abs, tag = 'smem constant byte address 0x4 - core index']
  #allocation1 [shape = 'u32[144,128]{1,0:T(1,128)}', space=vmem, size = 0x12000, scoped, tag = 'internal scratch']
  %s0 = inlined_call_operand.hbm [shape: f32[16,256], index: 0, kind: input, shape index: {}]
  %s1 = inlined_call_operand.hbm [shape: f32[256,256], index: 1, kind: input, shape index: {}]
  %s2 = inlined_call_operand.vmem [shape: f32[1,256], index: 2, kind: input, shape index: {}]
  %s3 = inlined_call_operand.hbm [shape: f32[16,256], index: 3, kind: output, shape index: {}]
  %s4 = sld [smem:[#allocation0]]
  $region30: #{tpu_custom_call.1} parent=0
    _
  %s6 = ssub.s32 1, %s4
  %s7 = scalar_select 0, %s6, %s4
  $region1: #{tpu_custom_call.1} parent=0
    #allocation2 [shape = 'u8[16384]{0}', space=vmem, size = 0x4000, scoped, tag = 'input window, operand 0, single buffered']
    #allocation3 [shape = 's32[1]{0}', space=sflag, size = 0x4, scoped, tag = 'scoped memory for tpu_custom_call.1']
    #allocation4 [shape = 's32[1]{0}', space=sflag, size = 0x4, scoped, tag = 'scoped memory for tpu_custom_call.1']
    #allocation5 [shape = 'u8[262144]{0}', space=vmem, size = 0x40000, scoped, tag = 'input window, operand 1, single buffered']
    #allocation6 [shape = 's32[1]{0}', space=sflag, size = 0x4, scoped, tag = 'scoped memory for tpu_custom_call.1']
    #allocation7 [shape = 'u8[16384]{0}', space=vmem, size = 0x4000, scoped, tag = 'output window, operand 0, single buffered']
    %8 = vsyncpa [#allocation3], 0
    %9 = vsyncpa [#allocation6], 0
    %10 = vsyncpa [#allocation4], 0
    // Predicated region
    $region2: #{tpu_custom_call.1} parent=1 // pred_check
      _
    $region3: #{tpu_custom_call.1} parent=1 // pred_check_branch
      %12 = sbr.rel (0) target = $region5
    $region4: #{tpu_custom_call.1} parent=1 // pred_region
      %s14 = ssub.s32 512, 512
      %15 = vsyncadd [#allocation3], %s14
      %s16 = sshll.u32 [#allocation2], 4
      %s17 = int_to_ptr.vmem [resolvable:$true] %s16
      %22 = dma.hbm_to_vmem [thread:$0]  %s0, 512, %s17, [#allocation3], 256, 256, 16
    $region5: #{tpu_custom_call.1} parent=1 // pred_fallthru
      _
    // Predicated region
    $region6: #{tpu_custom_call.1} parent=1 // pred_check
      _
    $region7: #{tpu_custom_call.1} parent=1 // pred_check_branch
      %24 = sbr.rel (0) target = $region9
    $region8: #{tpu_custom_call.1} parent=1 // pred_region
      %s26 = ssub.s32 8192, 8192
      %27 = vsyncadd [#allocation6], %s26
      %s28 = sshll.u32 [#allocation5], 4
      %s29 = int_to_ptr.vmem [resolvable:$true] %s28
      %34 = dma.hbm_to_vmem [thread:$0]  %s1, 8192, %s29, [#allocation6], 256, 256, 16
    $region9: #{tpu_custom_call.1} parent=1 // pred_fallthru
      _
    // Predicated region
    $region10: #{tpu_custom_call.1} parent=1 // pred_check
      _
    $region11: #{tpu_custom_call.1} parent=1 // pred_check_branch
      %36 = sbr.rel (0) target = $region13
    $region12: #{tpu_custom_call.1} parent=1 // pred_region
      _
    $region13: #{tpu_custom_call.1} parent=1 // pred_fallthru
      _
    // Predicated region
    $region14: #{tpu_custom_call.1} parent=1 // pred_check
      _
    $region15: #{tpu_custom_call.1} parent=1 // pred_check_branch
      %38 = sbr.rel (0) target = $region17
    $region16: #{tpu_custom_call.1} parent=1 // pred_region
      %39 = dma.done [#allocation3], 512
    $region17: #{tpu_custom_call.1} parent=1 // pred_fallthru
      _
    // Predicated region
    $region18: #{tpu_custom_call.1} parent=1 // pred_check
      _
    $region19: #{tpu_custom_call.1} parent=1 // pred_check_branch
      %41 = sbr.rel (0) target = $region21
    $region20: #{tpu_custom_call.1} parent=1 // pred_region
      %42 = dma.done [#allocation6], 8192
    $region21: #{tpu_custom_call.1} parent=1 // pred_fallthru
      _
    %v43 = vld [vmem:[#allocation2] sm:$0xff]
    %v44 = vld [vmem:[#allocation2 + $0x8] sm:$0xff]
    %v45 = vld [vmem:[#allocation2 + $0x10] sm:$0xff]
    %v46 = vld [vmem:[#allocation2 + $0x18] sm:$0xff]
    %v47 = vld [vmem:[#allocation5] sm:$0xff]
    %v48 = vld [vmem:[#allocation5 + $0x8] sm:$0xff]
    %v49 = vld [vmem:[#allocation5 + $0x10] sm:$0xff]
    %v50 = vld [vmem:[#allocation5 + $0x18] sm:$0xff]
    %v51 = vld [vmem:[#allocation5 + $0x20] sm:$0xff]
    %v52 = vld [vmem:[#allocation5 + $0x28] sm:$0xff]
    %v53 = vld [vmem:[#allocation5 + $0x30] sm:$0xff]
    %v54 = vld [vmem:[#allocation5 + $0x38] sm:$0xff]
    %v55 = vld [vmem:[#allocation5 + $0x40] sm:$0xff]
    %v56 = vld [vmem:[#allocation5 + $0x48] sm:$0xff]
    %v57 = vld [vmem:[#allocation5 + $0x50] sm:$0xff]
    %v58 = vld [vmem:[#allocation5 + $0x58] sm:$0xff]
    %v59 = vld [vmem:[#allocation5 + $0x60] sm:$0xff]
    %v60 = vld [vmem:[#allocation5 + $0x68] sm:$0xff]
    %v61 = vld [vmem:[#allocation5 + $0x70] sm:$0xff]
    %v62 = vld [vmem:[#allocation5 + $0x78] sm:$0xff]
    %v63 = vld [vmem:[#allocation5 + $0x80] sm:$0xff]
    %v64 = vld [vmem:[#allocation5 + $0x88] sm:$0xff]
    %v65 = vld [vmem:[#allocation5 + $0x90] sm:$0xff]
    %v66 = vld [vmem:[#allocation5 + $0x98] sm:$0xff]
    %v67 = vld [vmem:[#allocation5 + $0xa0] sm:$0xff]
    %v68 = vld [vmem:[#allocation5 + $0xa8] sm:$0xff]
    %v69 = vld [vmem:[#allocation5 + $0xb0] sm:$0xff]
    %v70 = vld [vmem:[#allocation5 + $0xb8] sm:$0xff]
    %v71 = vld [vmem:[#allocation5 + $0xc0] sm:$0xff]
    %v72 = vld [vmem:[#allocation5 + $0xc8] sm:$0xff]
    %v73 = vld [vmem:[#allocation5 + $0xd0] sm:$0xff]
    %v74 = vld [vmem:[#allocation5 + $0xd8] sm:$0xff]
    %v75 = vld [vmem:[#allocation5 + $0xe0] sm:$0xff]
    %v76 = vld [vmem:[#allocation5 + $0xe8] sm:$0xff]
    %v77 = vld [vmem:[#allocation5 + $0xf0] sm:$0xff]
    %v78 = vld [vmem:[#allocation5 + $0xf8] sm:$0xff]
    %v79 = vld [vmem:[#allocation5 + $0x100] sm:$0xff]
    %v80 = vld [vmem:[#allocation5 + $0x108] sm:$0xff]
    %v81 = vld [vmem:[#allocation5 + $0x110] sm:$0xff]
    %v82 = vld [vmem:[#allocation5 + $0x118] sm:$0xff]
    %v83 = vld [vmem:[#allocation5 + $0x120] sm:$0xff]
    %v84 = vld [vmem:[#allocation5 + $0x128] sm:$0xff]
    %v85 = vld [vmem:[#allocation5 + $0x130] sm:$0xff]
    %v86 = vld [vmem:[#allocation5 + $0x138] sm:$0xff]
    %v87 = vld [vmem:[#allocation5 + $0x140] sm:$0xff]
    %v88 = vld [vmem:[#allocation5 + $0x148] sm:$0xff]
    %v89 = vld [vmem:[#allocation5 + $0x150] sm:$0xff]
    %v90 = vld [vmem:[#allocation5 + $0x158] sm:$0xff]
    %v91 = vld [vmem:[#allocation5 + $0x160] sm:$0xff]
    %v92 = vld [vmem:[#allocation5 + $0x168] sm:$0xff]
    %v93 = vld [vmem:[#allocation5 + $0x170] sm:$0xff]
    %v94 = vld [vmem:[#allocation5 + $0x178] sm:$0xff]
    %v95 = vld [vmem:[#allocation5 + $0x180] sm:$0xff]
    %v96 = vld [vmem:[#allocation5 + $0x188] sm:$0xff]
    %v97 = vld [vmem:[#allocation5 + $0x190] sm:$0xff]
    %v98 = vld [vmem:[#allocation5 + $0x198] sm:$0xff]
    %v99 = vld [vmem:[#allocation5 + $0x1a0] sm:$0xff]
    %v100 = vld [vmem:[#allocation5 + $0x1a8] sm:$0xff]
    %v101 = vld [vmem:[#allocation5 + $0x1b0] sm:$0xff]
    %v102 = vld [vmem:[#allocation5 + $0x1b8] sm:$0xff]
    %v103 = vld [vmem:[#allocation5 + $0x1c0] sm:$0xff]
    %v104 = vld [vmem:[#allocation5 + $0x1c8] sm:$0xff]
    %v105 = vld [vmem:[#allocation5 + $0x1d0] sm:$0xff]
    %v106 = vld [vmem:[#allocation5 + $0x1d8] sm:$0xff]
    %v107 = vld [vmem:[#allocation5 + $0x1e0] sm:$0xff]
    %v108 = vld [vmem:[#allocation5 + $0x1e8] sm:$0xff]
    %v109 = vld [vmem:[#allocation5 + $0x1f0] sm:$0xff]
    %v110 = vld [vmem:[#allocation5 + $0x1f8] sm:$0xff]
    %v111 = vld [vmem:[%s2] sm:$0x3]
    %v113 = vlaneseq
    %v114 = vshrl.u32 %v113, 7
    %v115 = vsub.s32 0, %v114
    %v116 = vrot.slane %v111, %v115
    %v117 = vlaneseq
    %v118 = vshrl.u32 %v117, 7
    %v119 = vsub.s32 1, %v118
    %v120 = vrot.slane %v111, %v119
    %123 = vmatprep.subr.mxu0 %v48
    %124 = vmatpush1.msra.mxu0 %v47
    %125 = vmatprep.subr.mxu0 %v50
    %126 = vmatpush1.msra.mxu0 %v49
    %127 = vmatprep.subr.mxu0 %v52
    %128 = vmatpush1.msra.mxu0 %v51
    %129 = vmatprep.subr.mxu0 %v54
    %130 = vmatpush1.msra.mxu0 %v53
    %131 = vmatprep.subr.mxu0 %v56
    %132 = vmatpush1.msra.mxu0 %v55
    %133 = vmatprep.subr.mxu0 %v58
    %134 = vmatpush1.msra.mxu0 %v57
    %135 = vmatprep.subr.mxu0 %v60
    %136 = vmatpush1.msra.mxu0 %v59
    %137 = vmatprep.subr.mxu0 %v62
    %138 = vmatpush1.msra.mxu0 %v61
    %139 = vmatprep.subr.mxu0 %v64
    %140 = vmatpush1.msra.mxu0 %v63
    %141 = vmatprep.subr.mxu0 %v66
    %142 = vmatpush1.msra.mxu0 %v65
    %143 = vmatprep.subr.mxu0 %v68
    %144 = vmatpush1.msra.mxu0 %v67
    %145 = vmatprep.subr.mxu0 %v70
    %146 = vmatpush1.msra.mxu0 %v69
    %147 = vmatprep.subr.mxu0 %v72
    %148 = vmatpush1.msra.mxu0 %v71
    %149 = vmatprep.subr.mxu0 %v74
    %150 = vmatpush1.msra.mxu0 %v73
    %151 = vmatprep.subr.mxu0 %v76
    %152 = vmatpush1.msra.mxu0 %v75
    %153 = vmatprep.subr.mxu0 %v78
    %154 = vmatpush1.msra.mxu0 %v77
    %155 = vmatprep.subr.mxu0 %v80
    %156 = vmatpush1.msra.mxu0 %v79
    %157 = vmatprep.subr.mxu0 %v82
    %158 = vmatpush1.msra.mxu0 %v81
    %159 = vmatprep.subr.mxu0 %v84
    %160 = vmatpush1.msra.mxu0 %v83
    %161 = vmatprep.subr.mxu0 %v86
    %162 = vmatpush1.msra.mxu0 %v85
    %163 = vmatprep.subr.mxu0 %v88
    %164 = vmatpush1.msra.mxu0 %v87
    %165 = vmatprep.subr.mxu0 %v90
    %166 = vmatpush1.msra.mxu0 %v89
    %167 = vmatprep.subr.mxu0 %v92
    %168 = vmatpush1.msra.mxu0 %v91
    %169 = vmatprep.subr.mxu0 %v94
    %170 = vmatpush1.msra.mxu0 %v93
    %171 = vmatprep.subr.mxu0 %v96
    %172 = vmatpush1.msra.mxu0 %v95
    %173 = vmatprep.subr.mxu0 %v98
    %174 = vmatpush1.msra.mxu0 %v97
    %175 = vmatprep.subr.mxu0 %v100
    %176 = vmatpush1.msra.mxu0 %v99
    %177 = vmatprep.subr.mxu0 %v102
    %178 = vmatpush1.msra.mxu0 %v101
    %179 = vmatprep.subr.mxu0 %v104
    %180 = vmatpush1.msra.mxu0 %v103
    %181 = vmatprep.subr.mxu0 %v106
    %182 = vmatpush1.msra.mxu0 %v105
    %183 = vmatprep.subr.mxu0 %v108
    %184 = vmatpush1.msra.mxu0 %v107
    %185 = vmatprep.subr.mxu0 %v110
    %186 = vmatpush1.msra.mxu0 %v109
    %187 = vmatprep.mubr.f32.mxu0 %v44
    %188 = vmatmul.mubr.f32.gmra.mrb[0].mxu0 %v43
    %v189 = vpop.f32.mrb[0].mxu0
    %v190 = vadd.f32 %v116, %v189
    %v191 = vpop.f32.mrb[0].mxu0
    %v192 = vadd.f32 %v120, %v191
    %193 = vmatprep.mubr.f32.mxu0 %v46
    %194 = vmatmul.mubr.f32.gmra.mrb[0].mxu0 %v45
    %v195 = vpop.f32.mrb[0].mxu0
    %v196 = vadd.f32 %v116, %v195
    %v197 = vpop.f32.mrb[0].mxu0
    %v198 = vadd.f32 %v120, %v197
    %199 = vdwg.mxu0
    %v200 = vmax.f32 %v190, 0.0
    %v201 = vmax.f32 %v192, 0.0
    %v202 = vmax.f32 %v196, 0.0
    %v203 = vmax.f32 %v198, 0.0
    %204 = vst [vmem:[#allocation7] sm:$0xff] %v200
    %205 = vst [vmem:[#allocation7 + $0x8] sm:$0xff] %v201
    %206 = vst [vmem:[#allocation7 + $0x10] sm:$0xff] %v202
    %207 = vst [vmem:[#allocation7 + $0x18] sm:$0xff] %v203
    // Predicated region
    $region22: #{tpu_custom_call.1} parent=1 // pred_check
      _
    $region23: #{tpu_custom_call.1} parent=1 // pred_check_branch
      %209 = sbr.rel (0) target = $region25
    $region24: #{tpu_custom_call.1} parent=1 // pred_region
      %s211 = ssub.s32 512, 512
      %212 = vsyncadd [#allocation4], %s211
      %s213 = sshll.u32 [#allocation7], 4
      %s214 = int_to_ptr.vmem [resolvable:$true] %s213
      %219 = dma.vmem_to_hbm [thread:$0]  %s214, 512, %s3, [#allocation4], 256, 256, 16
    $region25: #{tpu_custom_call.1} parent=1 // pred_fallthru
      _
    // Predicated region
    $region26: #{tpu_custom_call.1} parent=1 // pred_check
      _
    $region27: #{tpu_custom_call.1} parent=1 // pred_check_branch
      %221 = sbr.rel (0) target = $region29
    $region28: #{tpu_custom_call.1} parent=1 // pred_region
      %222 = dma.done [#allocation4], 512
    $region29: #{tpu_custom_call.1} parent=1 // pred_fallthru
      _
    %223 = vsyncpa [#allocation3], 1
    %224 = vsyncpa [#allocation6], 1
    %225 = vsyncpa [#allocation4], 1

</llo_original>
